<compile_context>
chip_gen: v6e
topology: v6e:2x2x1
jax: 0.10.0
libtpu: 0.0.40
codegen_flags: <defaults>
</compile_context>

<pallas_src>
import math

import jax
import jax.numpy as jnp
import numpy as np
from jax.experimental import pallas as pl

B = 2            # batch
S = 8            # seq len
DIM = 64         # model dim
NH = 4           # n_heads
HD = DIM // NH   # head dim = 16
BS = B * S       # 16 tokens total
P = B * NH * S   # 64 packed attention rows (batch * heads * seq)
SCALE = 1.0 / math.sqrt(HD)


# ---------------- Pallas kernel: full batch, heads packed block-diagonally ----------------
def attention_kernel(x_ref, mask_ref, cs_ref, wqkv_ref, wo_ref, o_ref):
    x = x_ref[...]                       # (B*S, DIM) f32
    mask = mask_ref[...]                 # (P, P) combined causal + block-diagonal mask
    cos = cs_ref[0:BS, :]                # (B*S, DIM) duplicated cos   [c0,c0,c1,c1,...]
    sin = cs_ref[BS:2 * BS, :]           # (B*S, DIM) signed sin       [-s0,+s0,-s1,+s1,...]

    # One fused projection: columns = [Wq | Wk | Wv | Wq pair-swapped | Wk pair-swapped]
    qkv = jnp.dot(x.astype(jnp.bfloat16), wqkv_ref[...],
                  preferred_element_type=jnp.float32)            # (B*S, 5*DIM) f32

    q = qkv[:, 0 * DIM:1 * DIM]
    k = qkv[:, 1 * DIM:2 * DIM]
    v = qkv[:, 2 * DIM:3 * DIM]
    qs = qkv[:, 3 * DIM:4 * DIM]   # q with adjacent pairs swapped (folded into the weight)
    ks = qkv[:, 4 * DIM:5 * DIM]   # k with adjacent pairs swapped

    # Rotary embedding, purely elementwise (f32):
    #   out[2i]   = x[2i]*cos_i - x[2i+1]*sin_i
    #   out[2i+1] = x[2i+1]*cos_i + x[2i]*sin_i
    rq = q * cos + qs * sin
    rk = k * cos + ks * sin

    # pack (B*S, NH*HD) -> (B*NH*S, HD): put every (batch, head) block on sublanes.
    # Static slices + concatenate only (robust Mosaic lowering at this size).
    def pack(t):
        blocks = []
        for b in range(B):
            tb = t[b * S:(b + 1) * S, :]                  # (S, DIM)
            for h in range(NH):
                blocks.append(tb[:, h * HD:(h + 1) * HD])  # (S, HD)
        return jnp.concatenate(blocks, axis=0)             # (P, HD)

    qp = pack(rq).astype(jnp.bfloat16)   # (P, HD) bf16 MXU operands
    kp = pack(rk).astype(jnp.bfloat16)
    vp = pack(v).astype(jnp.bfloat16)

    # ONE block-diagonal score matmul for all (batch, head) blocks, then ONE softmax.
    s = jax.lax.dot_general(qp, kp, (((1,), (1,)), ((), ())),
                            preferred_element_type=jnp.float32)   # (P, P) f32
    s = s * SCALE + mask                 # mask removes cross-head/cross-batch & future pos
    s = s - jnp.max(s, axis=-1, keepdims=True)
    p = jnp.exp(s)
    p = p * pl.reciprocal(jnp.sum(p, axis=-1, keepdims=True), approx=True)

    # ONE PV matmul.
    op = jnp.dot(p.astype(jnp.bfloat16), vp,
                 preferred_element_type=jnp.float32)              # (P, HD) f32

    # unpack (B*NH*S, HD) -> (B*S, NH*HD), then ONE out-projection matmul (head-sum
    # becomes the K contraction inside the MXU).
    rows = []
    for b in range(B):
        heads = [op[(b * NH + h) * S:(b * NH + h + 1) * S, :] for h in range(NH)]
        rows.append(jnp.concatenate(heads, axis=1))               # (S, DIM)
    o = jnp.concatenate(rows, axis=0)                             # (B*S, DIM)

    o_ref[...] = jnp.dot(o.astype(jnp.bfloat16), wo_ref[...],
                         preferred_element_type=jnp.float32).astype(o_ref.dtype)


# ---------------- wrapper ----------------
@jax.jit
def attention_forward(x, mask_p, cs, wqkv_bf, wo_bf):
    xf = x.reshape(BS, DIM)
    out = pl.pallas_call(
        attention_kernel,
        out_shape=jax.ShapeDtypeStruct((BS, DIM), jnp.float32),
        # no grid: single step, whole arrays resident in VMEM (~80 KB total)
    )(xf, mask_p, cs, wqkv_bf, wo_bf)
    return out.reshape(B, S, DIM)


# ---------------- pure-JAX reference (mirrors torch Attention.forward, cache None) ----------------
def reference_attention(x, mask, ang, wqT, wkT, wvT, woT):
    hi = jax.lax.Precision.HIGHEST
    q = jnp.dot(x, wqT, precision=hi)
    k = jnp.dot(x, wkT, precision=hi)
    v = jnp.dot(x, wvT, precision=hi)
    q = q.reshape(B, S, NH, HD)
    k = k.reshape(B, S, NH, HD)
    v = v.reshape(B, S, NH, HD)

    cos = jnp.cos(ang)[None, :, None, :]   # (1, S, 1, HD//2)
    sin = jnp.sin(ang)[None, :, None, :]

    def rope(t):
        tr = t.reshape(B, S, NH, HD // 2, 2)
        te, to = tr[..., 0], tr[..., 1]
        oe = te * cos - to * sin
        oo = te * sin + to * cos
        return jnp.stack([oe, oo], axis=-1).reshape(B, S, NH, HD)

    q = rope(q)
    k = rope(k)

    qT = q.transpose(0, 2, 1, 3)
    kT = k.transpose(0, 2, 1, 3)
    vT = v.transpose(0, 2, 1, 3)
    scores = jnp.einsum('bhsd,bhtd->bhst', qT, kT, precision=hi) / math.sqrt(HD)
    scores = scores + mask[None, None, :, :]
    p = jax.nn.softmax(scores, axis=-1)
    out = jnp.einsum('bhst,bhtd->bhsd', p, vT, precision=hi)
    out = out.transpose(0, 2, 1, 3).reshape(B, S, DIM)
    return jnp.dot(out, woT, precision=hi)


if __name__ == "__main__":
    key = jax.random.PRNGKey(0)
    kx, kq, kk, kv, ko = jax.random.split(key, 5)

    x = jax.random.normal(kx, (B, S, DIM), dtype=jnp.float32)

    # additive causal mask (S, S) for the reference (== torch kv_mask, additive/broadcast)
    i = jnp.arange(S)[:, None]
    j = jnp.arange(S)[None, :]
    causal = jnp.where(j <= i, 0.0, -1e9).astype(jnp.float32)

    # packed (P, P) mask for the kernel: causal inside each (batch, head) diagonal block,
    # -1e9 everywhere else (kills cross-head / cross-batch terms of the packed matmul)
    ii = jnp.arange(P)
    blk = ii // S
    pos = ii % S
    same_block = blk[:, None] == blk[None, :]
    causal_ok = pos[None, :] <= pos[:, None]
    mask_p = jnp.where(same_block & causal_ok, 0.0, -1e9).astype(jnp.float32)   # (P, P)

    # rotary angles (LLaMA precompute_freqs_cis, theta=10000): freqs_cis = exp(i*ang)
    inv_freq = 1.0 / (10000.0 ** (jnp.arange(0, HD, 2, dtype=jnp.float32) / HD))  # (HD//2,)
    t = jnp.arange(S, dtype=jnp.float32)
    ang = jnp.outer(t, inv_freq)                                   # (S, HD//2)
    cos_head = jnp.repeat(jnp.cos(ang), 2, axis=-1)                # (S, HD)  [c0,c0,c1,c1,...]
    sin_head = jnp.stack([-jnp.sin(ang), jnp.sin(ang)], -1).reshape(S, HD)  # [-s0,+s0,...]
    cos_full = jnp.tile(jnp.tile(cos_head, (1, NH)), (B, 1))       # (B*S, DIM)
    sin_full = jnp.tile(jnp.tile(sin_head, (1, NH)), (B, 1))       # (B*S, DIM)
    cs = jnp.concatenate([cos_full, sin_full], axis=0)             # (2*B*S, DIM) merged slab

    # parameters, pre-transposed to (in, out) so y = x @ W; init std 1/sqrt(DIM)
    std = 1.0 / math.sqrt(DIM)
    wqT = std * jax.random.normal(kq, (DIM, DIM), dtype=jnp.float32)
    wkT = std * jax.random.normal(kk, (DIM, DIM), dtype=jnp.float32)
    wvT = std * jax.random.normal(kv, (DIM, DIM), dtype=jnp.float32)
    woT = std * jax.random.normal(ko, (DIM, DIM), dtype=jnp.float32)

    # bf16 weight copies used by the kernel (accumulation stays f32)
    wq_bf = wqT.astype(jnp.bfloat16)
    wk_bf = wkT.astype(jnp.bfloat16)
    wv_bf = wvT.astype(jnp.bfloat16)
    wo_bf = woT.astype(jnp.bfloat16)

    # fold the RoPE adjacent-pair swap into extra fused columns (exact: pure column permute)
    swap_cols = jnp.arange(DIM) ^ 1
    wqkv_bf = jnp.concatenate(
        [wq_bf, wk_bf, wv_bf, wq_bf[:, swap_cols], wk_bf[:, swap_cols]], axis=1)  # (DIM, 5*DIM)

    out = attention_forward(x, mask_p, cs, wqkv_bf, wo_bf)
    out = jax.block_until_ready(out)

    # reference uses the same (bf16-rounded) parameters, in f32 math.
    # atol is slightly wider than before because the score/PV matmuls now deliberately feed
    # bf16 operands to the MXU (review item); pl.reciprocal(approx=True) is also intentional.
    ref = reference_attention(x, causal, ang,
                              wq_bf.astype(jnp.float32), wk_bf.astype(jnp.float32),
                              wv_bf.astype(jnp.float32), wo_bf.astype(jnp.float32))
    np.testing.assert_allclose(np.asarray(out), np.asarray(ref), rtol=2e-2, atol=3e-2)

    # TODO(synk): cache_k / cache_v inference path (kv-cache writeback & reuse) not
    # implemented; kernel covers the training path (cache_k is None), which is the
    # attention output the module returns in that case.
    print("KERNEL_OK")
</pallas_src>

<mosaic_0001>
module attributes {stable_mosaic.version = 11 : i64} {
  func.func @attention_kernel(%arg0: memref<16x64xf32, #tpu.memory_space<vmem>>, %arg1: memref<64x64xf32, #tpu.memory_space<vmem>>, %arg2: memref<32x64xf32, #tpu.memory_space<vmem>>, %arg3: memref<64x320xbf16, #tpu.memory_space<vmem>>, %arg4: memref<64x64xbf16, #tpu.memory_space<vmem>>, %arg5: memref<16x64xf32, #tpu.memory_space<vmem>>) attributes {dimension_semantics = [], scalar_prefetch = 0 : i64, scratch_operands = 0 : i64, tpu.core_type = #tpu.core_type<tc>} {
    %c0 = arith.constant 0 : index
    %c0_0 = arith.constant 0 : index
    %0 = vector.load %arg0[%c0, %c0_0] : memref<16x64xf32, #tpu.memory_space<vmem>>, vector<16x64xf32>
    %c0_1 = arith.constant 0 : index
    %c0_2 = arith.constant 0 : index
    %1 = vector.load %arg1[%c0_1, %c0_2] : memref<64x64xf32, #tpu.memory_space<vmem>>, vector<64x64xf32>
    %c0_3 = arith.constant 0 : index
    %c0_4 = arith.constant 0 : index
    %2 = vector.load %arg2[%c0_3, %c0_4] : memref<32x64xf32, #tpu.memory_space<vmem>>, vector<16x64xf32>
    %c16 = arith.constant 16 : index
    %c0_5 = arith.constant 0 : index
    %3 = vector.load %arg2[%c16, %c0_5] : memref<32x64xf32, #tpu.memory_space<vmem>>, vector<16x64xf32>
    %4 = arith.truncf %0 : vector<16x64xf32> to vector<16x64xbf16>
    %c0_6 = arith.constant 0 : index
    %c0_7 = arith.constant 0 : index
    %5 = vector.load %arg3[%c0_6, %c0_7] : memref<64x320xbf16, #tpu.memory_space<vmem>>, vector<64x320xbf16>
    %cst = arith.constant dense<0.000000e+00> : vector<16x320xf32>
    %6 = tpu.matmul %4, %5, %cst {dimension_numbers = #tpu.dot_dimension_numbers<[1], [0], [0], [1], [0, 0, 1, 1], [], []>} : vector<16x64xbf16>, vector<64x320xbf16>, vector<16x320xf32> -> vector<16x320xf32>
    %7 = vector.extract_strided_slice %6 {offsets = [0, 0], sizes = [16, 64], strides = [1, 1]} : vector<16x320xf32> to vector<16x64xf32>
    %8 = vector.extract_strided_slice %6 {offsets = [0, 64], sizes = [16, 64], strides = [1, 1]} : vector<16x320xf32> to vector<16x64xf32>
    %9 = vector.extract_strided_slice %6 {offsets = [0, 128], sizes = [16, 64], strides = [1, 1]} : vector<16x320xf32> to vector<16x64xf32>
    %10 = vector.extract_strided_slice %6 {offsets = [0, 192], sizes = [16, 64], strides = [1, 1]} : vector<16x320xf32> to vector<16x64xf32>
    %11 = vector.extract_strided_slice %6 {offsets = [0, 256], sizes = [16, 64], strides = [1, 1]} : vector<16x320xf32> to vector<16x64xf32>
    %12 = arith.mulf %7, %2 : vector<16x64xf32>
    %13 = arith.mulf %10, %3 : vector<16x64xf32>
    %14 = arith.addf %12, %13 : vector<16x64xf32>
    %15 = arith.mulf %8, %2 : vector<16x64xf32>
    %16 = arith.mulf %11, %3 : vector<16x64xf32>
    %17 = arith.addf %15, %16 : vector<16x64xf32>
    %18 = vector.extract_strided_slice %14 {offsets = [0, 0], sizes = [8, 64], strides = [1, 1]} : vector<16x64xf32> to vector<8x64xf32>
    %19 = vector.extract_strided_slice %18 {offsets = [0, 0], sizes = [8, 16], strides = [1, 1]} : vector<8x64xf32> to vector<8x16xf32>
    %20 = vector.extract_strided_slice %18 {offsets = [0, 16], sizes = [8, 16], strides = [1, 1]} : vector<8x64xf32> to vector<8x16xf32>
    %21 = vector.extract_strided_slice %18 {offsets = [0, 32], sizes = [8, 16], strides = [1, 1]} : vector<8x64xf32> to vector<8x16xf32>
    %22 = vector.extract_strided_slice %18 {offsets = [0, 48], sizes = [8, 16], strides = [1, 1]} : vector<8x64xf32> to vector<8x16xf32>
    %23 = vector.extract_strided_slice %14 {offsets = [8, 0], sizes = [8, 64], strides = [1, 1]} : vector<16x64xf32> to vector<8x64xf32>
    %24 = vector.extract_strided_slice %23 {offsets = [0, 0], sizes = [8, 16], strides = [1, 1]} : vector<8x64xf32> to vector<8x16xf32>
    %25 = vector.extract_strided_slice %23 {offsets = [0, 16], sizes = [8, 16], strides = [1, 1]} : vector<8x64xf32> to vector<8x16xf32>
    %26 = vector.extract_strided_slice %23 {offsets = [0, 32], sizes = [8, 16], strides = [1, 1]} : vector<8x64xf32> to vector<8x16xf32>
    %27 = vector.extract_strided_slice %23 {offsets = [0, 48], sizes = [8, 16], strides = [1, 1]} : vector<8x64xf32> to vector<8x16xf32>
    %28 = tpu.concatenate %19, %20, %21, %22, %24, %25, %26, %27 in 0 : vector<8x16xf32>, vector<8x16xf32>, vector<8x16xf32>, vector<8x16xf32>, vector<8x16xf32>, vector<8x16xf32>, vector<8x16xf32>, vector<8x16xf32> -> vector<64x16xf32>
    %29 = arith.truncf %28 : vector<64x16xf32> to vector<64x16xbf16>
    %30 = vector.extract_strided_slice %17 {offsets = [0, 0], sizes = [8, 64], strides = [1, 1]} : vector<16x64xf32> to vector<8x64xf32>
    %31 = vector.extract_strided_slice %30 {offsets = [0, 0], sizes = [8, 16], strides = [1, 1]} : vector<8x64xf32> to vector<8x16xf32>
    %32 = vector.extract_strided_slice %30 {offsets = [0, 16], sizes = [8, 16], strides = [1, 1]} : vector<8x64xf32> to vector<8x16xf32>
    %33 = vector.extract_strided_slice %30 {offsets = [0, 32], sizes = [8, 16], strides = [1, 1]} : vector<8x64xf32> to vector<8x16xf32>
    %34 = vector.extract_strided_slice %30 {offsets = [0, 48], sizes = [8, 16], strides = [1, 1]} : vector<8x64xf32> to vector<8x16xf32>
    %35 = vector.extract_strided_slice %17 {offsets = [8, 0], sizes = [8, 64], strides = [1, 1]} : vector<16x64xf32> to vector<8x64xf32>
    %36 = vector.extract_strided_slice %35 {offsets = [0, 0], sizes = [8, 16], strides = [1, 1]} : vector<8x64xf32> to vector<8x16xf32>
    %37 = vector.extract_strided_slice %35 {offsets = [0, 16], sizes = [8, 16], strides = [1, 1]} : vector<8x64xf32> to vector<8x16xf32>
    %38 = vector.extract_strided_slice %35 {offsets = [0, 32], sizes = [8, 16], strides = [1, 1]} : vector<8x64xf32> to vector<8x16xf32>
    %39 = vector.extract_strided_slice %35 {offsets = [0, 48], sizes = [8, 16], strides = [1, 1]} : vector<8x64xf32> to vector<8x16xf32>
    %40 = tpu.concatenate %31, %32, %33, %34, %36, %37, %38, %39 in 0 : vector<8x16xf32>, vector<8x16xf32>, vector<8x16xf32>, vector<8x16xf32>, vector<8x16xf32>, vector<8x16xf32>, vector<8x16xf32>, vector<8x16xf32> -> vector<64x16xf32>
    %41 = arith.truncf %40 : vector<64x16xf32> to vector<64x16xbf16>
    %42 = vector.extract_strided_slice %9 {offsets = [0, 0], sizes = [8, 64], strides = [1, 1]} : vector<16x64xf32> to vector<8x64xf32>
    %43 = vector.extract_strided_slice %42 {offsets = [0, 0], sizes = [8, 16], strides = [1, 1]} : vector<8x64xf32> to vector<8x16xf32>
    %44 = vector.extract_strided_slice %42 {offsets = [0, 16], sizes = [8, 16], strides = [1, 1]} : vector<8x64xf32> to vector<8x16xf32>
    %45 = vector.extract_strided_slice %42 {offsets = [0, 32], sizes = [8, 16], strides = [1, 1]} : vector<8x64xf32> to vector<8x16xf32>
    %46 = vector.extract_strided_slice %42 {offsets = [0, 48], sizes = [8, 16], strides = [1, 1]} : vector<8x64xf32> to vector<8x16xf32>
    %47 = vector.extract_strided_slice %9 {offsets = [8, 0], sizes = [8, 64], strides = [1, 1]} : vector<16x64xf32> to vector<8x64xf32>
    %48 = vector.extract_strided_slice %47 {offsets = [0, 0], sizes = [8, 16], strides = [1, 1]} : vector<8x64xf32> to vector<8x16xf32>
    %49 = vector.extract_strided_slice %47 {offsets = [0, 16], sizes = [8, 16], strides = [1, 1]} : vector<8x64xf32> to vector<8x16xf32>
    %50 = vector.extract_strided_slice %47 {offsets = [0, 32], sizes = [8, 16], strides = [1, 1]} : vector<8x64xf32> to vector<8x16xf32>
    %51 = vector.extract_strided_slice %47 {offsets = [0, 48], sizes = [8, 16], strides = [1, 1]} : vector<8x64xf32> to vector<8x16xf32>
    %52 = tpu.concatenate %43, %44, %45, %46, %48, %49, %50, %51 in 0 : vector<8x16xf32>, vector<8x16xf32>, vector<8x16xf32>, vector<8x16xf32>, vector<8x16xf32>, vector<8x16xf32>, vector<8x16xf32>, vector<8x16xf32> -> vector<64x16xf32>
    %53 = arith.truncf %52 : vector<64x16xf32> to vector<64x16xbf16>
    %cst_8 = arith.constant dense<0.000000e+00> : vector<64x64xf32>
    %54 = tpu.matmul %29, %41, %cst_8 {dimension_numbers = #tpu.dot_dimension_numbers<[1], [1], [0], [0], [0, 0, 1, 0], [], []>} : vector<64x16xbf16>, vector<64x16xbf16>, vector<64x64xf32> -> vector<64x64xf32>
    %cst_9 = arith.constant 2.500000e-01 : f32
    %55 = vector.broadcast %cst_9 : f32 to vector<64x64xf32>
    %56 = arith.mulf %54, %55 : vector<64x64xf32>
    %57 = arith.addf %56, %1 : vector<64x64xf32>
    %cst_10 = arith.constant dense<0xFF800000> : vector<64xf32>
    %58 = vector.multi_reduction <maximumf>, %57, %cst_10 [1] : vector<64x64xf32> to vector<64xf32>
    %59 = vector.shape_cast %58 : vector<64xf32> to vector<64x1xf32>
    %60 = vector.broadcast %59 : vector<64x1xf32> to vector<64x64xf32>
    %61 = arith.subf %57, %60 : vector<64x64xf32>
    %62 = math.exp %61 : vector<64x64xf32>
    %cst_11 = arith.constant dense<0.000000e+00> : vector<64xf32>
    %63 = vector.multi_reduction <add>, %62, %cst_11 [1] : vector<64x64xf32> to vector<64xf32>
    %64 = vector.shape_cast %63 : vector<64xf32> to vector<64x1xf32>
    %65 = tpu.reciprocal %64 {approx = true} : vector<64x1xf32> -> vector<64x1xf32>
    %66 = vector.broadcast %65 : vector<64x1xf32> to vector<64x64xf32>
    %67 = arith.mulf %62, %66 : vector<64x64xf32>
    %68 = arith.truncf %67 : vector<64x64xf32> to vector<64x64xbf16>
    %cst_12 = arith.constant dense<0.000000e+00> : vector<64x16xf32>
    %69 = tpu.matmul %68, %53, %cst_12 {dimension_numbers = #tpu.dot_dimension_numbers<[1], [0], [0], [1], [0, 0, 1, 1], [], []>} : vector<64x64xbf16>, vector<64x16xbf16>, vector<64x16xf32> -> vector<64x16xf32>
    %70 = vector.extract_strided_slice %69 {offsets = [0, 0], sizes = [8, 16], strides = [1, 1]} : vector<64x16xf32> to vector<8x16xf32>
    %71 = vector.extract_strided_slice %69 {offsets = [8, 0], sizes = [8, 16], strides = [1, 1]} : vector<64x16xf32> to vector<8x16xf32>
    %72 = vector.extract_strided_slice %69 {offsets = [16, 0], sizes = [8, 16], strides = [1, 1]} : vector<64x16xf32> to vector<8x16xf32>
    %73 = vector.extract_strided_slice %69 {offsets = [24, 0], sizes = [8, 16], strides = [1, 1]} : vector<64x16xf32> to vector<8x16xf32>
    %74 = tpu.concatenate %70, %71, %72, %73 in 1 : vector<8x16xf32>, vector<8x16xf32>, vector<8x16xf32>, vector<8x16xf32> -> vector<8x64xf32>
    %75 = vector.extract_strided_slice %69 {offsets = [32, 0], sizes = [8, 16], strides = [1, 1]} : vector<64x16xf32> to vector<8x16xf32>
    %76 = vector.extract_strided_slice %69 {offsets = [40, 0], sizes = [8, 16], strides = [1, 1]} : vector<64x16xf32> to vector<8x16xf32>
    %77 = vector.extract_strided_slice %69 {offsets = [48, 0], sizes = [8, 16], strides = [1, 1]} : vector<64x16xf32> to vector<8x16xf32>
    %78 = vector.extract_strided_slice %69 {offsets = [56, 0], sizes = [8, 16], strides = [1, 1]} : vector<64x16xf32> to vector<8x16xf32>
    %79 = tpu.concatenate %75, %76, %77, %78 in 1 : vector<8x16xf32>, vector<8x16xf32>, vector<8x16xf32>, vector<8x16xf32> -> vector<8x64xf32>
    %80 = tpu.concatenate %74, %79 in 0 : vector<8x64xf32>, vector<8x64xf32> -> vector<16x64xf32>
    %81 = arith.truncf %80 : vector<16x64xf32> to vector<16x64xbf16>
    %c0_13 = arith.constant 0 : index
    %c0_14 = arith.constant 0 : index
    %82 = vector.load %arg4[%c0_13, %c0_14] : memref<64x64xbf16, #tpu.memory_space<vmem>>, vector<64x64xbf16>
    %cst_15 = arith.constant dense<0.000000e+00> : vector<16x64xf32>
    %83 = tpu.matmul %81, %82, %cst_15 {dimension_numbers = #tpu.dot_dimension_numbers<[1], [0], [0], [1], [0, 0, 1, 1], [], []>} : vector<16x64xbf16>, vector<64x64xbf16>, vector<16x64xf32> -> vector<16x64xf32>
    %c0_16 = arith.constant 0 : index
    %c0_17 = arith.constant 0 : index
    %84 = vector.load %arg5[%c0_16, %c0_17] : memref<16x64xf32, #tpu.memory_space<vmem>>, vector<16x64xf32>
    tpu.vector_store %arg5[%c0_16, %c0_17], %83 {strides = array<i32>} : memref<16x64xf32, #tpu.memory_space<vmem>>, vector<16x64xf32>,
    return
  }
}

</mosaic_0001>

<llo_original>
// kernel: attention_forward.1
$region0: #{attention_forward.1}
  #allocation0 [shape = 'u32[]', space=smem, size = 0x4, offset = 0x4, fixed_abs, tag = 'smem constant byte address 0x4 - core index']
  #allocation1 [shape = 'u32[144,128]{1,0:T(1,128)}', space=vmem, size = 0x12000, scoped, tag = 'internal scratch']
  %s0 = inlined_call_operand.hbm [shape: f32[16,64], index: 0, kind: input, shape index: {}]
  %s1 = inlined_call_operand.hbm [shape: f32[64,64], index: 1, kind: input, shape index: {}]
  %s2 = inlined_call_operand.hbm [shape: f32[32,64], index: 2, kind: input, shape index: {}]
  %s3 = inlined_call_operand.hbm [shape: bf16[64,320], index: 3, kind: input, shape index: {}]
  %s4 = inlined_call_operand.hbm [shape: bf16[64,64], index: 4, kind: input, shape index: {}]
  %s5 = inlined_call_operand.hbm [shape: f32[16,64], index: 5, kind: output, shape index: {}]
  %s6 = sld [smem:[#allocation0]]
  $region50: #{attention_forward.1} parent=0
    _
  %s8 = ssub.s32 1, %s6
  %s9 = scalar_select 0, %s8, %s6
  $region1: #{attention_forward.1} parent=0
    #allocation2 [shape = 'u8[8192]{0}', space=vmem, size = 0x2000, scoped, tag = 'input window, operand 0, single buffered']
    #allocation3 [shape = 's32[1]{0}', space=sflag, size = 0x4, scoped, tag = 'scoped memory for attention_forward.1']
    #allocation4 [shape = 's32[1]{0}', space=sflag, size = 0x4, scoped, tag = 'scoped memory for attention_forward.1']
    #allocation5 [shape = 'u8[32768]{0}', space=vmem, size = 0x8000, scoped, tag = 'input window, operand 1, single buffered']
    #allocation6 [shape = 's32[1]{0}', space=sflag, size = 0x4, scoped, tag = 'scoped memory for attention_forward.1']
    #allocation7 [shape = 'u8[16384]{0}', space=vmem, size = 0x4000, scoped, tag = 'input window, operand 2, single buffered']
    #allocation8 [shape = 'u8[49152]{0}', space=vmem, size = 0xc000, scoped, tag = 'input window, operand 3, single buffered']
    #allocation9 [shape = 's32[1]{0}', space=sflag, size = 0x4, scoped, tag = 'scoped memory for attention_forward.1']
    #allocation10 [shape = 'u8[16384]{0}', space=vmem, size = 0x4000, scoped, tag = 'input window, operand 4, single buffered']
    #allocation11 [shape = 'u8[8192]{0}', space=vmem, size = 0x2000, scoped, tag = 'output window, operand 0, single buffered']
    %10 = vsyncpa [#allocation3], 0
    %11 = vsyncpa [#allocation6], 0
    %12 = vsyncpa [#allocation9], 0
    %13 = vsyncpa [#allocation4], 0
    // Predicated region
    $region2: #{attention_forward.1} parent=1 // pred_check
      _
    $region3: #{attention_forward.1} parent=1 // pred_check_branch
      %15 = sbr.rel (0) target = $region5
    $region4: #{attention_forward.1} parent=1 // pred_region
      %s17 = ssub.s32 256, 256
      %18 = vsyncadd [#allocation3], %s17
      %s19 = sshll.u32 [#allocation2], 4
      %s20 = int_to_ptr.vmem [resolvable:$true] %s19
      %25 = dma.hbm_to_vmem [thread:$0]  %s0, 256, %s20, [#allocation3], 128, 128, 8
    $region5: #{attention_forward.1} parent=1 // pred_fallthru
      _
    // Predicated region
    $region6: #{attention_forward.1} parent=1 // pred_check
      _
    $region7: #{attention_forward.1} parent=1 // pred_check_branch
      %27 = sbr.rel (0) target = $region9
    $region8: #{attention_forward.1} parent=1 // pred_region
      %s29 = ssub.s32 1024, 1024
      %30 = vsyncadd [#allocation6], %s29
      %s31 = sshll.u32 [#allocation5], 4
      %s32 = int_to_ptr.vmem [resolvable:$true] %s31
      %37 = dma.hbm_to_vmem [thread:$0]  %s1, 1024, %s32, [#allocation6], 128, 128, 8
    $region9: #{attention_forward.1} parent=1 // pred_fallthru
      _
    // Predicated region
    $region10: #{attention_forward.1} parent=1 // pred_check
      _
    $region11: #{attention_forward.1} parent=1 // pred_check_branch
      %39 = sbr.rel (0) target = $region13
    $region12: #{attention_forward.1} parent=1 // pred_region
      %s41 = ssub.s32 512, 512
      %42 = vsyncadd [#allocation6], %s41
      %s43 = sshll.u32 [#allocation7], 4
      %s44 = int_to_ptr.vmem [resolvable:$true] %s43
      %49 = dma.hbm_to_vmem [thread:$0]  %s2, 512, %s44, [#allocation6], 128, 128, 8
    $region13: #{attention_forward.1} parent=1 // pred_fallthru
      _
    // Predicated region
    $region14: #{attention_forward.1} parent=1 // pred_check
      _
    $region15: #{attention_forward.1} parent=1 // pred_check_branch
      %51 = sbr.rel (0) target = $region17
    $region16: #{attention_forward.1} parent=1 // pred_region
      %s53 = ssub.s32 1536, 1536
      %54 = vsyncadd [#allocation9], %s53
      %s55 = sshll.u32 [#allocation8], 4
      %s56 = int_to_ptr.vmem [resolvable:$true] %s55
      %61 = dma.hbm_to_vmem [thread:$0]  %s3, 1536, %s56, [#allocation9], 192, 192, 12
    $region17: #{attention_forward.1} parent=1 // pred_fallthru
      _
    // Predicated region
    $region18: #{attention_forward.1} parent=1 // pred_check
      _
    $region19: #{attention_forward.1} parent=1 // pred_check_branch
      %63 = sbr.rel (0) target = $region21
    $region20: #{attention_forward.1} parent=1 // pred_region
      %s65 = ssub.s32 512, 512
      %66 = vsyncadd [#allocation9], %s65
      %s67 = sshll.u32 [#allocation10], 4
      %s68 = int_to_ptr.vmem [resolvable:$true] %s67
      %73 = dma.hbm_to_vmem [thread:$0]  %s4, 512, %s68, [#allocation9], 64, 64, 4
    $region21: #{attention_forward.1} parent=1 // pred_fallthru
      _
    // Predicated region
    $region22: #{attention_forward.1} parent=1 // pred_check
      _
    $region23: #{attention_forward.1} parent=1 // pred_check_branch
      %75 = sbr.rel (0) target = $region25
    $region24: #{attention_forward.1} parent=1 // pred_region
      %76 = dma.done [#allocation3], 256
    $region25: #{attention_forward.1} parent=1 // pred_fallthru
      _
    // Predicated region
    $region26: #{attention_forward.1} parent=1 // pred_check
      _
    $region27: #{attention_forward.1} parent=1 // pred_check_branch
      %78 = sbr.rel (0) target = $region29
    $region28: #{attention_forward.1} parent=1 // pred_region
      %79 = dma.done [#allocation6], 1024
    $region29: #{attention_forward.1} parent=1 // pred_fallthru
      _
    // Predicated region
    $region30: #{attention_forward.1} parent=1 // pred_check
      _
    $region31: #{attention_forward.1} parent=1 // pred_check_branch
      %81 = sbr.rel (0) target = $region33
    $region32: #{attention_forward.1} parent=1 // pred_region
      %82 = dma.done [#allocation6], 512
    $region33: #{attention_forward.1} parent=1 // pred_fallthru
      _
    // Predicated region
    $region34: #{attention_forward.1} parent=1 // pred_check
      _
    $region35: #{attention_forward.1} parent=1 // pred_check_branch
      %84 = sbr.rel (0) target = $region37
    $region36: #{attention_forward.1} parent=1 // pred_region
      %85 = dma.done [#allocation9], 1536
    $region37: #{attention_forward.1} parent=1 // pred_fallthru
      _
    // Predicated region
    $region38: #{attention_forward.1} parent=1 // pred_check
      _
    $region39: #{attention_forward.1} parent=1 // pred_check_branch
      %87 = sbr.rel (0) target = $region41
    $region40: #{attention_forward.1} parent=1 // pred_region
      %88 = dma.done [#allocation9], 512
    $region41: #{attention_forward.1} parent=1 // pred_fallthru
      _
    %v90 = vld [vmem:[#allocation2] sm:$0xff]
    %v91 = vld [vmem:[#allocation2 + $0x8] sm:$0xff]
    %v92 = vld [vmem:[#allocation5] sm:$0xff]
    %v93 = vld [vmem:[#allocation5 + $0x8] sm:$0xff]
    %v94 = vld [vmem:[#allocation5 + $0x10] sm:$0xff]
    %v95 = vld [vmem:[#allocation5 + $0x18] sm:$0xff]
    %v96 = vld [vmem:[#allocation5 + $0x20] sm:$0xff]
    %v97 = vld [vmem:[#allocation5 + $0x28] sm:$0xff]
    %v98 = vld [vmem:[#allocation5 + $0x30] sm:$0xff]
    %v99 = vld [vmem:[#allocation5 + $0x38] sm:$0xff]
    %v100 = vld [vmem:[#allocation7] sm:$0xff]
    %v101 = vld [vmem:[#allocation7 + $0x8] sm:$0xff]
    %v102 = vld [vmem:[#allocation7 + $0x10] sm:$0xff]
    %v103 = vld [vmem:[#allocation7 + $0x18] sm:$0xff]
    %v104 = vpack.c.bf16 %v91, %v90
    %v105 = vld [vmem:[#allocation8] sm:$0xff]
    %v106 = vld [vmem:[#allocation8 + $0x8] sm:$0xf]
    %v107 = vld [vmem:[#allocation8 + $0xc] sm:$0xff]
    %v108 = vld [vmem:[#allocation8 + $0x14] sm:$0xf]
    %v109 = vld [vmem:[#allocation8 + $0x18] sm:$0xff]
    %v110 = vld [vmem:[#allocation8 + $0x20] sm:$0xf]
    %v111 = vld [vmem:[#allocation8 + $0x24] sm:$0xff]
    %v112 = vld [vmem:[#allocation8 + $0x2c] sm:$0xf]
    %v113 = vld [vmem:[#allocation8 + $0x30] sm:$0xff]
    %v114 = vld [vmem:[#allocation8 + $0x38] sm:$0xf]
    %v115 = vld [vmem:[#allocation8 + $0x3c] sm:$0xff]
    %v116 = vld [vmem:[#allocation8 + $0x44] sm:$0xf]
    %v117 = vld [vmem:[#allocation8 + $0x48] sm:$0xff]
    %v118 = vld [vmem:[#allocation8 + $0x50] sm:$0xf]
    %v119 = vld [vmem:[#allocation8 + $0x54] sm:$0xff]
    %v120 = vld [vmem:[#allocation8 + $0x5c] sm:$0xf]
    %v137 = vunpack.c.l.b16 %v105
    %v138 = vunpack.c.h.b16 %v105
    %v139 = vunpack.c.l.b16 %v106
    %v140 = vunpack.c.l.b16 %v107
    %v141 = vunpack.c.h.b16 %v107
    %v142 = vunpack.c.l.b16 %v108
    %v143 = vunpack.c.l.b16 %v109
    %v144 = vunpack.c.h.b16 %v109
    %v145 = vunpack.c.l.b16 %v110
    %v146 = vunpack.c.l.b16 %v111
    %v147 = vunpack.c.h.b16 %v111
    %v148 = vunpack.c.l.b16 %v112
    %v149 = vunpack.c.l.b16 %v113
    %v150 = vunpack.c.h.b16 %v113
    %v151 = vunpack.c.l.b16 %v114
    %v152 = vunpack.c.l.b16 %v115
    %v153 = vunpack.c.h.b16 %v115
    %v154 = vunpack.c.l.b16 %v116
    %v155 = vunpack.c.l.b16 %v117
    %v156 = vunpack.c.h.b16 %v117
    %v157 = vunpack.c.l.b16 %v118
    %v158 = vunpack.c.l.b16 %v119
    %v159 = vunpack.c.h.b16 %v119
    %v160 = vunpack.c.l.b16 %v120
    %v161 = vpack.c.b16 %v140, %v137
    %v162 = vpack.c.b16 %v141, %v138
    %v163 = vpack.c.b16 %v142, %v139
    %v164 = vpack.c.b16 %v146, %v143
    %v165 = vpack.c.b16 %v147, %v144
    %v166 = vpack.c.b16 %v148, %v145
    %v167 = vpack.c.b16 %v152, %v149
    %v168 = vpack.c.b16 %v153, %v150
    %v169 = vpack.c.b16 %v154, %v151
    %v170 = vpack.c.b16 %v158, %v155
    %v171 = vpack.c.b16 %v159, %v156
    %v172 = vpack.c.b16 %v160, %v157
    %vm185 = vcmask 523264
    %v187 = vsel %vm185, %v104, 0
    %189 = vmatprep.subr.bf16.mxu0 0
    %190 = vmatpush1.bf16.msra.mxu0 0
    %191 = vmatprep.subr.bf16.mxu0 0
    %192 = vmatpush1.bf16.msra.mxu0 0
    %193 = vmatprep.subr.bf16.mxu0 0
    %194 = vmatpush1.bf16.msra.mxu0 0
    %195 = vmatprep.subr.bf16.mxu0 0
    %196 = vmatpush1.bf16.msra.mxu0 0
    %197 = vmatprep.subr.bf16.mxu0 %v171
    %198 = vmatpush1.bf16.msra.mxu0 %v170
    %199 = vmatprep.subr.bf16.mxu0 %v168
    %200 = vmatpush1.bf16.msra.mxu0 %v167
    %201 = vmatprep.subr.bf16.mxu0 %v165
    %202 = vmatpush1.bf16.msra.mxu0 %v164
    %203 = vmatprep.subr.bf16.mxu0 %v162
    %204 = vmatpush1.bf16.msra.mxu0 %v161
    %205 = vmatprep.subr.bf16.mxu0 0
    %206 = vmatpush2.bf16.msra.mxu0 0
    %207 = vmatprep.subr.bf16.mxu0 0
    %208 = vmatpush2.bf16.msra.mxu0 0
    %209 = vmatprep.subr.bf16.mxu0 0
    %210 = vmatpush2.bf16.msra.mxu0 0
    %211 = vmatprep.subr.bf16.mxu0 0
    %212 = vmatpush2.bf16.msra.mxu0 0
    %213 = vmatprep.subr.bf16.mxu0 0
    %214 = vmatpush2.bf16.msra.mxu0 0
    %215 = vmatprep.subr.bf16.mxu0 0
    %216 = vmatpush2.bf16.msra.mxu0 0
    %217 = vmatprep.subr.bf16.mxu0 0
    %218 = vmatpush2.bf16.msra.mxu0 0
    %219 = vmatprep.subr.bf16.mxu0 0
    %220 = vmatpush2.bf16.msra.mxu0 0
    %221 = vmatprep.mubr.bf16.mxu0 0
    %222 = vmatmul.mubr.bf16.gmra.mxu0 %v187
    %v223 = vpop.f32.mrf.mxu0
    %v224 = vadd.f32 0.0, %v223
    %v225 = vpop.f32.mrf.mxu0
    %v226 = vadd.f32 0.0, %v225
    %v227 = vpop.f32.mrf.mxu0
    %v228 = vadd.f32 0.0, %v227
    %v229 = vpop.f32.mrf.mxu0
    %v230 = vadd.f32 0.0, %v229
    %231 = vdwg.mxu0
    %232 = vmatprep.subr.bf16.mxu0 0
    %233 = vmatpush1.bf16.msra.mxu0 0
    %234 = vmatprep.subr.bf16.mxu0 0
    %235 = vmatpush1.bf16.msra.mxu0 0
    %236 = vmatprep.subr.bf16.mxu0 0
    %237 = vmatpush1.bf16.msra.mxu0 0
    %238 = vmatprep.subr.bf16.mxu0 0
    %239 = vmatpush1.bf16.msra.mxu0 0
    %240 = vmatprep.subr.bf16.mxu0 0
    %241 = vmatpush1.bf16.msra.mxu0 %v172
    %242 = vmatprep.subr.bf16.mxu0 0
    %243 = vmatpush1.bf16.msra.mxu0 %v169
    %244 = vmatprep.subr.bf16.mxu0 0
    %245 = vmatpush1.bf16.msra.mxu0 %v166
    %246 = vmatprep.subr.bf16.mxu0 0
    %247 = vmatpush1.bf16.msra.mxu0 %v163
    %248 = vmatprep.subr.bf16.mxu0 0
    %249 = vmatpush2.bf16.msra.mxu0 0
    %250 = vmatprep.subr.bf16.mxu0 0
    %251 = vmatpush2.bf16.msra.mxu0 0
    %252 = vmatprep.subr.bf16.mxu0 0
    %253 = vmatpush2.bf16.msra.mxu0 0
    %254 = vmatprep.subr.bf16.mxu0 0
    %255 = vmatpush2.bf16.msra.mxu0 0
    %256 = vmatprep.subr.bf16.mxu0 0
    %257 = vmatpush2.bf16.msra.mxu0 0
    %258 = vmatprep.subr.bf16.mxu0 0
    %259 = vmatpush2.bf16.msra.mxu0 0
    %260 = vmatprep.subr.bf16.mxu0 0
    %261 = vmatpush2.bf16.msra.mxu0 0
    %262 = vmatprep.subr.bf16.mxu0 0
    %263 = vmatpush2.bf16.msra.mxu0 0
    %264 = vmatprep.mubr.bf16.mxu0 0
    %265 = vmatmul.mubr.bf16.gmra.mxu0 %v187
    %v266 = vpop.f32.mrf.mxu0
    %v267 = vadd.f32 0.0, %v266
    %v268 = vpop.f32.mrf.mxu0
    %v269 = vpop.f32.mrf.mxu0
    %v270 = vadd.f32 0.0, %v269
    %v271 = vpop.f32.mrf.mxu0
    %272 = vdwg.mxu0
    %v273 = vmul.f32 %v224, %v100
    %v274 = vmul.f32 %v228, %v101
    %277 = vrot.lane.b32.xlu0 %v102, 64
    %v278 = vpop.permute.xlu0 %277
    %279 = vrot.lane.b32.xlu0 %v103, 64
    %v280 = vpop.permute.xlu0 %279
    %v283 = vmul.f32 %v226, %v278
    %v284 = vmul.f32 %v230, %v280
    %287 = vrot.lane.b32.xlu0 %v283, 64
    %v288 = vpop.permute.xlu0 %287
    %289 = vrot.lane.b32.xlu0 %v284, 64
    %v290 = vpop.permute.xlu0 %289
    %v293 = vadd.f32 %v273, %v288
    %v294 = vadd.f32 %v274, %v290
    %297 = vrot.lane.b32.xlu0 %v100, 64
    %v298 = vpop.permute.xlu0 %297
    %299 = vrot.lane.b32.xlu0 %v101, 64
    %v300 = vpop.permute.xlu0 %299
    %v303 = vmul.f32 %v224, %v298
    %v304 = vmul.f32 %v228, %v300
    %v305 = vmul.f32 %v267, %v102
    %v306 = vmul.f32 %v270, %v103
    %309 = vrot.lane.b32.xlu0 %v305, 64
    %v310 = vpop.permute.xlu0 %309
    %311 = vrot.lane.b32.xlu0 %v306, 64
    %v312 = vpop.permute.xlu0 %311
    %v315 = vadd.f32 %v303, %v310
    %v316 = vadd.f32 %v304, %v312
    %318 = vrot.lane.b32.xlu0 %v293, 112
    %v319 = vpop.permute.xlu0 %318
    %321 = vrot.lane.b32.xlu0 %v293, 96
    %v322 = vpop.permute.xlu0 %321
    %324 = vrot.lane.b32.xlu0 %v293, 80
    %v325 = vpop.permute.xlu0 %324
    %328 = vrot.lane.b32.xlu0 %v294, 112
    %v329 = vpop.permute.xlu0 %328
    %331 = vrot.lane.b32.xlu0 %v294, 96
    %v332 = vpop.permute.xlu0 %331
    %334 = vrot.lane.b32.xlu0 %v294, 80
    %v335 = vpop.permute.xlu0 %334
    %v337 = vpack.c.bf16 %v319, %v293
    %v338 = vpack.c.bf16 %v325, %v322
    %v339 = vpack.c.bf16 %v329, %v294
    %v340 = vpack.c.bf16 %v335, %v332
    %342 = vrot.lane.b32.xlu0 %v315, 112
    %v343 = vpop.permute.xlu0 %342
    %345 = vrot.lane.b32.xlu0 %v315, 96
    %v346 = vpop.permute.xlu0 %345
    %348 = vrot.lane.b32.xlu0 %v315, 80
    %v349 = vpop.permute.xlu0 %348
    %352 = vrot.lane.b32.xlu0 %v316, 112
    %v353 = vpop.permute.xlu0 %352
    %355 = vrot.lane.b32.xlu0 %v316, 96
    %v356 = vpop.permute.xlu0 %355
    %358 = vrot.lane.b32.xlu0 %v316, 80
    %v359 = vpop.permute.xlu0 %358
    %v361 = vpack.c.bf16 %v343, %v315
    %v362 = vpack.c.bf16 %v349, %v346
    %v363 = vpack.c.bf16 %v353, %v316
    %v364 = vpack.c.bf16 %v359, %v356
    %366 = vrot.lane.b32.xlu0 %v226, 112
    %v367 = vpop.permute.xlu0 %366
    %369 = vrot.lane.b32.xlu0 %v226, 96
    %v370 = vpop.permute.xlu0 %369
    %372 = vrot.lane.b32.xlu0 %v226, 80
    %v373 = vpop.permute.xlu0 %372
    %376 = vrot.lane.b32.xlu0 %v230, 112
    %v377 = vpop.permute.xlu0 %376
    %379 = vrot.lane.b32.xlu0 %v230, 96
    %v380 = vpop.permute.xlu0 %379
    %382 = vrot.lane.b32.xlu0 %v230, 80
    %v383 = vpop.permute.xlu0 %382
    %v385 = vpack.c.bf16 %v367, %v226
    %v386 = vpack.c.bf16 %v373, %v370
    %v387 = vpack.c.bf16 %v377, %v230
    %v388 = vpack.c.bf16 %v383, %v380
    %393 = vrot.lane.b32.xlu0 %v361, 64
    %v394 = vpop.permute.xlu0 %393
    %395 = vrot.lane.b32.xlu0 %v362, 64
    %v396 = vpop.permute.xlu0 %395
    %397 = vrot.lane.b32.xlu0 %v363, 64
    %v398 = vpop.permute.xlu0 %397
    %399 = vrot.lane.b32.xlu0 %v364, 64
    %v400 = vpop.permute.xlu0 %399
    %vm401 = vcmask 130048
    %v403 = vsel %vm401, %v337, 0
    %v406 = vsel %vm401, %v338, 0
    %v409 = vsel %vm401, %v339, 0
    %v412 = vsel %vm401, %v340, 0
    %v415 = vsel %vm401, %v394, 0
    %v418 = vsel %vm401, %v396, 0
    %v421 = vsel %vm401, %v398, 0
    %v424 = vsel %vm401, %v400, 0
    %426 = vmatprep.subr.bf16.mxu0 0
    %427 = vmatpush1.bf16.xpose.msra.mxu0 0
    %428 = vmatprep.subr.bf16.mxu0 0
    %429 = vmatpush1.bf16.xpose.msra.mxu0 0
    %430 = vmatprep.subr.bf16.mxu0 0
    %431 = vmatpush1.bf16.xpose.msra.mxu0 0
    %432 = vmatprep.subr.bf16.mxu0 0
    %433 = vmatpush1.bf16.xpose.msra.mxu0 0
    %434 = vmatprep.subr.bf16.mxu0 0
    %435 = vmatpush1.bf16.xpose.msra.mxu0 %v424
    %436 = vmatprep.subr.bf16.mxu0 0
    %437 = vmatpush1.bf16.xpose.msra.mxu0 %v421
    %438 = vmatprep.subr.bf16.mxu0 0
    %439 = vmatpush1.bf16.xpose.msra.mxu0 %v418
    %440 = vmatprep.subr.bf16.mxu0 0
    %441 = vmatpush1.bf16.xpose.msra.mxu0 %v415
    %442 = vmatprep.subr.bf16.mxu0 0
    %443 = vmatpush2.bf16.xpose.msra.mxu0 0
    %444 = vmatprep.subr.bf16.mxu0 0
    %445 = vmatpush2.bf16.xpose.msra.mxu0 0
    %446 = vmatprep.subr.bf16.mxu0 0
    %447 = vmatpush2.bf16.xpose.msra.mxu0 0
    %448 = vmatprep.subr.bf16.mxu0 0
    %449 = vmatpush2.bf16.xpose.msra.mxu0 0
    %450 = vmatprep.subr.bf16.mxu0 0
    %451 = vmatpush2.bf16.xpose.msra.mxu0 0
    %452 = vmatprep.subr.bf16.mxu0 0
    %453 = vmatpush2.bf16.xpose.msra.mxu0 0
    %454 = vmatprep.subr.bf16.mxu0 0
    %455 = vmatpush2.bf16.xpose.msra.mxu0 0
    %456 = vmatprep.subr.bf16.mxu0 0
    %457 = vmatpush2.bf16.xpose.msra.mxu0 0
    %458 = vmatprep.mubr.bf16.mxu0 0
    %459 = vmatmul.mubr.bf16.gmra.mxu0 %v403
    %v460 = vpop.f32.mrf.mxu0
    %v461 = vadd.f32 0.0, %v460
    %v462 = vpop.f32.mrf.mxu0
    %v463 = vpop.f32.mrf.mxu0
    %v464 = vadd.f32 0.0, %v463
    %v465 = vpop.f32.mrf.mxu0
    %466 = vmatprep.mubr.bf16.mxu0 0
    %467 = vmatmul.mubr.bf16.gmra.mxu0 %v406
    %v468 = vpop.f32.mrf.mxu0
    %v469 = vadd.f32 0.0, %v468
    %v470 = vpop.f32.mrf.mxu0
    %v471 = vpop.f32.mrf.mxu0
    %v472 = vadd.f32 0.0, %v471
    %v473 = vpop.f32.mrf.mxu0
    %474 = vmatprep.mubr.bf16.mxu0 0
    %475 = vmatmul.mubr.bf16.gmra.mxu0 %v409
    %v476 = vpop.f32.mrf.mxu0
    %v477 = vadd.f32 0.0, %v476
    %v478 = vpop.f32.mrf.mxu0
    %v479 = vpop.f32.mrf.mxu0
    %v480 = vadd.f32 0.0, %v479
    %v481 = vpop.f32.mrf.mxu0
    %482 = vmatprep.mubr.bf16.mxu0 0
    %483 = vmatmul.mubr.bf16.gmra.mxu0 %v412
    %v484 = vpop.f32.mrf.mxu0
    %v485 = vadd.f32 0.0, %v484
    %v486 = vpop.f32.mrf.mxu0
    %v487 = vpop.f32.mrf.mxu0
    %v488 = vadd.f32 0.0, %v487
    %v489 = vpop.f32.mrf.mxu0
    %490 = vdwg.mxu0
    %v491 = vmul.f32 %v461, 0.25
    %v492 = vmul.f32 %v464, 0.25
    %v493 = vmul.f32 %v469, 0.25
    %v494 = vmul.f32 %v472, 0.25
    %v495 = vmul.f32 %v477, 0.25
    %v496 = vmul.f32 %v480, 0.25
    %v497 = vmul.f32 %v485, 0.25
    %v498 = vmul.f32 %v488, 0.25
    %v499 = vadd.f32 %v491, %v92
    %v500 = vadd.f32 %v492, %v93
    %v501 = vadd.f32 %v493, %v94
    %v502 = vadd.f32 %v494, %v95
    %v503 = vadd.f32 %v495, %v96
    %v504 = vadd.f32 %v496, %v97
    %v505 = vadd.f32 %v497, %v98
    %v506 = vadd.f32 %v498, %v99
    %v507 = vsel %vm185, %v499, -inf
    %508 = vmax.xlane.f32.xlu0 %v507
    %v509 = vpop.xlane.xlu0 %508
    %v510 = vsel %vm185, %v500, -inf
    %511 = vmax.xlane.f32.xlu0 %v510
    %v512 = vpop.xlane.xlu0 %511
    %v513 = vsel %vm185, %v501, -inf
    %514 = vmax.xlane.f32.xlu0 %v513
    %v515 = vpop.xlane.xlu0 %514
    %v516 = vsel %vm185, %v502, -inf
    %517 = vmax.xlane.f32.xlu0 %v516
    %v518 = vpop.xlane.xlu0 %517
    %v519 = vsel %vm185, %v503, -inf
    %520 = vmax.xlane.f32.xlu0 %v519
    %v521 = vpop.xlane.xlu0 %520
    %v522 = vsel %vm185, %v504, -inf
    %523 = vmax.xlane.f32.xlu0 %v522
    %v524 = vpop.xlane.xlu0 %523
    %v525 = vsel %vm185, %v505, -inf
    %526 = vmax.xlane.f32.xlu0 %v525
    %v527 = vpop.xlane.xlu0 %526
    %v528 = vsel %vm185, %v506, -inf
    %529 = vmax.xlane.f32.xlu0 %v528
    %v530 = vpop.xlane.xlu0 %529
    %v531 = vsub.f32 %v499, %v509
    %v532 = vsub.f32 %v500, %v512
    %v533 = vsub.f32 %v501, %v515
    %v534 = vsub.f32 %v502, %v518
    %v535 = vsub.f32 %v503, %v521
    %v536 = vsub.f32 %v504, %v524
    %v537 = vsub.f32 %v505, %v527
    %v538 = vsub.f32 %v506, %v530
    %v539 = vmul.f32 %v531, 1.442695
    %v540 = vpow.pop %v539
    %v541 = vmul.f32 %v532, 1.442695
    %v542 = vpow.pop %v541
    %v543 = vmul.f32 %v533, 1.442695
    %v544 = vpow.pop %v543
    %v545 = vmul.f32 %v534, 1.442695
    %v546 = vpow.pop %v545
    %v547 = vmul.f32 %v535, 1.442695
    %v548 = vpow.pop %v547
    %v549 = vmul.f32 %v536, 1.442695
    %v550 = vpow.pop %v549
    %v551 = vmul.f32 %v537, 1.442695
    %v552 = vpow.pop %v551
    %v553 = vmul.f32 %v538, 1.442695
    %v554 = vpow.pop %v553
    %v555 = vsel %vm185, %v540, 0.0
    %556 = vadd.xlane.f32.xlu0 %v555
    %v557 = vpop.xlane.xlu0 %556
    %v558 = vsel %vm185, %v542, 0.0
    %559 = vadd.xlane.f32.xlu0 %v558
    %v560 = vpop.xlane.xlu0 %559
    %v561 = vsel %vm185, %v544, 0.0
    %562 = vadd.xlane.f32.xlu0 %v561
    %v563 = vpop.xlane.xlu0 %562
    %v564 = vsel %vm185, %v546, 0.0
    %565 = vadd.xlane.f32.xlu0 %v564
    %v566 = vpop.xlane.xlu0 %565
    %v567 = vsel %vm185, %v548, 0.0
    %568 = vadd.xlane.f32.xlu0 %v567
    %v569 = vpop.xlane.xlu0 %568
    %v570 = vsel %vm185, %v550, 0.0
    %571 = vadd.xlane.f32.xlu0 %v570
    %v572 = vpop.xlane.xlu0 %571
    %v573 = vsel %vm185, %v552, 0.0
    %574 = vadd.xlane.f32.xlu0 %v573
    %v575 = vpop.xlane.xlu0 %574
    %v576 = vsel %vm185, %v554, 0.0
    %577 = vadd.xlane.f32.xlu0 %v576
    %v578 = vpop.xlane.xlu0 %577
    %v579 = vrcp.pop %v557
    %v580 = vrcp.pop %v560
    %v581 = vrcp.pop %v563
    %v582 = vrcp.pop %v566
    %v583 = vrcp.pop %v569
    %v584 = vrcp.pop %v572
    %v585 = vrcp.pop %v575
    %v586 = vrcp.pop %v578
    %v587 = vmul.f32 %v540, %v579
    %v588 = vmul.f32 %v542, %v580
    %v589 = vmul.f32 %v544, %v581
    %v590 = vmul.f32 %v546, %v582
    %v591 = vmul.f32 %v548, %v583
    %v592 = vmul.f32 %v550, %v584
    %v593 = vmul.f32 %v552, %v585
    %v594 = vmul.f32 %v554, %v586
    %v595 = vpack.c.bf16 %v588, %v587
    %v596 = vpack.c.bf16 %v590, %v589
    %v597 = vpack.c.bf16 %v592, %v591
    %v598 = vpack.c.bf16 %v594, %v593
    %v600 = vsel %vm185, %v595, 0
    %v603 = vsel %vm185, %v596, 0
    %v606 = vsel %vm185, %v597, 0
    %v609 = vsel %vm185, %v598, 0
    %611 = vmatprep.subr.bf16.mxu0 0
    %612 = vmatpush1.bf16.msra.mxu0 0
    %613 = vmatprep.subr.bf16.mxu0 0
    %614 = vmatpush1.bf16.msra.mxu0 0
    %615 = vmatprep.subr.bf16.mxu0 0
    %616 = vmatpush1.bf16.msra.mxu0 0
    %617 = vmatprep.subr.bf16.mxu0 0
    %618 = vmatpush1.bf16.msra.mxu0 0
    %619 = vmatprep.subr.bf16.mxu0 0
    %620 = vmatpush1.bf16.msra.mxu0 %v388
    %621 = vmatprep.subr.bf16.mxu0 0
    %622 = vmatpush1.bf16.msra.mxu0 %v387
    %623 = vmatprep.subr.bf16.mxu0 0
    %624 = vmatpush1.bf16.msra.mxu0 %v386
    %625 = vmatprep.subr.bf16.mxu0 0
    %626 = vmatpush1.bf16.msra.mxu0 %v385
    %627 = vmatprep.subr.bf16.mxu0 0
    %628 = vmatpush2.bf16.msra.mxu0 0
    %629 = vmatprep.subr.bf16.mxu0 0
    %630 = vmatpush2.bf16.msra.mxu0 0
    %631 = vmatprep.subr.bf16.mxu0 0
    %632 = vmatpush2.bf16.msra.mxu0 0
    %633 = vmatprep.subr.bf16.mxu0 0
    %634 = vmatpush2.bf16.msra.mxu0 0
    %635 = vmatprep.subr.bf16.mxu0 0
    %636 = vmatpush2.bf16.msra.mxu0 0
    %637 = vmatprep.subr.bf16.mxu0 0
    %638 = vmatpush2.bf16.msra.mxu0 0
    %639 = vmatprep.subr.bf16.mxu0 0
    %640 = vmatpush2.bf16.msra.mxu0 0
    %641 = vmatprep.subr.bf16.mxu0 0
    %642 = vmatpush2.bf16.msra.mxu0 0
    %643 = vmatprep.mubr.bf16.mxu0 0
    %644 = vmatmul.mubr.bf16.gmra.mxu0 %v600
    %v645 = vpop.f32.mrf.mxu0
    %v646 = vadd.f32 0.0, %v645
    %v647 = vpop.f32.mrf.mxu0
    %v648 = vpop.f32.mrf.mxu0
    %v649 = vadd.f32 0.0, %v648
    %v650 = vpop.f32.mrf.mxu0
    %651 = vmatprep.mubr.bf16.mxu0 0
    %652 = vmatmul.mubr.bf16.gmra.mxu0 %v603
    %v653 = vpop.f32.mrf.mxu0
    %v654 = vadd.f32 0.0, %v653
    %v655 = vpop.f32.mrf.mxu0
    %v656 = vpop.f32.mrf.mxu0
    %v657 = vadd.f32 0.0, %v656
    %v658 = vpop.f32.mrf.mxu0
    %659 = vmatprep.mubr.bf16.mxu0 0
    %660 = vmatmul.mubr.bf16.gmra.mxu0 %v606
    %v661 = vpop.f32.mrf.mxu0
    %v662 = vadd.f32 0.0, %v661
    %v663 = vpop.f32.mrf.mxu0
    %v664 = vpop.f32.mrf.mxu0
    %v665 = vadd.f32 0.0, %v664
    %v666 = vpop.f32.mrf.mxu0
    %667 = vmatprep.mubr.bf16.mxu0 0
    %668 = vmatmul.mubr.bf16.gmra.mxu0 %v609
    %v669 = vpop.f32.mrf.mxu0
    %v670 = vadd.f32 0.0, %v669
    %v671 = vpop.f32.mrf.mxu0
    %v672 = vpop.f32.mrf.mxu0
    %v673 = vadd.f32 0.0, %v672
    %v674 = vpop.f32.mrf.mxu0
    %675 = vdwg.mxu0
    %677 = vrot.lane.b32.xlu0 %v649, 16
    %v678 = vpop.permute.xlu0 %677
    %681 = vrot.lane.b32.xlu0 %v654, 32
    %v682 = vpop.permute.xlu0 %681
    %685 = vrot.lane.b32.xlu0 %v657, 48
    %v686 = vpop.permute.xlu0 %685
    %v688 = vsel %vm401, %v646, %v678
    %vm689 = vcmask 261120
    %v690 = vsel %vm689, %v688, %v682
    %vm691 = vcmask 392192
    %v692 = vsel %vm691, %v690, %v686
    %694 = vrot.lane.b32.xlu0 %v665, 16
    %v695 = vpop.permute.xlu0 %694
    %698 = vrot.lane.b32.xlu0 %v670, 32
    %v699 = vpop.permute.xlu0 %698
    %702 = vrot.lane.b32.xlu0 %v673, 48
    %v703 = vpop.permute.xlu0 %702
    %v705 = vsel %vm401, %v662, %v695
    %v706 = vsel %vm689, %v705, %v699
    %v707 = vsel %vm691, %v706, %v703
    %v708 = vpack.c.bf16 %v707, %v692
    %v709 = vld [vmem:[#allocation10] sm:$0xf]
    %v710 = vld [vmem:[#allocation10 + $0x4] sm:$0xf]
    %v711 = vld [vmem:[#allocation10 + $0x8] sm:$0xf]
    %v712 = vld [vmem:[#allocation10 + $0xc] sm:$0xf]
    %v713 = vld [vmem:[#allocation10 + $0x10] sm:$0xf]
    %v714 = vld [vmem:[#allocation10 + $0x14] sm:$0xf]
    %v715 = vld [vmem:[#allocation10 + $0x18] sm:$0xf]
    %v716 = vld [vmem:[#allocation10 + $0x1c] sm:$0xf]
    %v725 = vunpack.c.l.b16 %v709
    %v726 = vunpack.c.l.b16 %v710
    %v727 = vunpack.c.l.b16 %v711
    %v728 = vunpack.c.l.b16 %v712
    %v729 = vunpack.c.l.b16 %v713
    %v730 = vunpack.c.l.b16 %v714
    %v731 = vunpack.c.l.b16 %v715
    %v732 = vunpack.c.l.b16 %v716
    %v733 = vpack.c.b16 %v726, %v725
    %v734 = vpack.c.b16 %v728, %v727
    %v735 = vpack.c.b16 %v730, %v729
    %v736 = vpack.c.b16 %v732, %v731
    %v742 = vsel %vm185, %v708, 0
    %744 = vmatprep.subr.bf16.mxu0 0
    %745 = vmatpush1.bf16.msra.mxu0 0
    %746 = vmatprep.subr.bf16.mxu0 0
    %747 = vmatpush1.bf16.msra.mxu0 0
    %748 = vmatprep.subr.bf16.mxu0 0
    %749 = vmatpush1.bf16.msra.mxu0 0
    %750 = vmatprep.subr.bf16.mxu0 0
    %751 = vmatpush1.bf16.msra.mxu0 0
    %752 = vmatprep.subr.bf16.mxu0 0
    %753 = vmatpush1.bf16.msra.mxu0 %v736
    %754 = vmatprep.subr.bf16.mxu0 0
    %755 = vmatpush1.bf16.msra.mxu0 %v735
    %756 = vmatprep.subr.bf16.mxu0 0
    %757 = vmatpush1.bf16.msra.mxu0 %v734
    %758 = vmatprep.subr.bf16.mxu0 0
    %759 = vmatpush1.bf16.msra.mxu0 %v733
    %760 = vmatprep.subr.bf16.mxu0 0
    %761 = vmatpush2.bf16.msra.mxu0 0
    %762 = vmatprep.subr.bf16.mxu0 0
    %763 = vmatpush2.bf16.msra.mxu0 0
    %764 = vmatprep.subr.bf16.mxu0 0
    %765 = vmatpush2.bf16.msra.mxu0 0
    %766 = vmatprep.subr.bf16.mxu0 0
    %767 = vmatpush2.bf16.msra.mxu0 0
    %768 = vmatprep.subr.bf16.mxu0 0
    %769 = vmatpush2.bf16.msra.mxu0 0
    %770 = vmatprep.subr.bf16.mxu0 0
    %771 = vmatpush2.bf16.msra.mxu0 0
    %772 = vmatprep.subr.bf16.mxu0 0
    %773 = vmatpush2.bf16.msra.mxu0 0
    %774 = vmatprep.subr.bf16.mxu0 0
    %775 = vmatpush2.bf16.msra.mxu0 0
    %776 = vmatprep.mubr.bf16.mxu0 0
    %777 = vmatmul.mubr.bf16.gmra.mxu0 %v742
    %v778 = vpop.f32.mrf.mxu0
    %v779 = vadd.f32 0.0, %v778
    %v780 = vpop.f32.mrf.mxu0
    %v781 = vpop.f32.mrf.mxu0
    %v782 = vadd.f32 0.0, %v781
    %v783 = vpop.f32.mrf.mxu0
    %784 = vdwg.mxu0
    %785 = vst.msk [vmem:[#allocation11] sm:$0xff] %vm185, %v779
    %786 = vst.msk [vmem:[#allocation11 + $0x8] sm:$0xff] %vm185, %v782
    // Predicated region
    $region42: #{attention_forward.1} parent=1 // pred_check
      _
    $region43: #{attention_forward.1} parent=1 // pred_check_branch
      %788 = sbr.rel (0) target = $region45
    $region44: #{attention_forward.1} parent=1 // pred_region
      %s790 = ssub.s32 256, 256
      %791 = vsyncadd [#allocation4], %s790
      %s792 = sshll.u32 [#allocation11], 4
      %s793 = int_to_ptr.vmem [resolvable:$true] %s792
      %798 = dma.vmem_to_hbm [thread:$0]  %s793, 256, %s5, [#allocation4], 128, 128, 8
    $region45: #{attention_forward.1} parent=1 // pred_fallthru
      _
    // Predicated region
    $region46: #{attention_forward.1} parent=1 // pred_check
      _
    $region47: #{attention_forward.1} parent=1 // pred_check_branch
      %800 = sbr.rel (0) target = $region49
    $region48: #{attention_forward.1} parent=1 // pred_region
      %801 = dma.done [#allocation4], 256
    $region49: #{attention_forward.1} parent=1 // pred_fallthru
      _
    %802 = vsyncpa [#allocation3], 1
    %803 = vsyncpa [#allocation6], 1
    %804 = vsyncpa [#allocation9], 1
    %805 = vsyncpa [#allocation4], 1

</llo_original>
